<compile_context>
chip_gen: v6e
topology: v6e:2x2x1
jax: 0.10.0
libtpu: 0.0.40
codegen_flags: <defaults>
</compile_context>

<pallas_src>
import jax
import jax.numpy as jnp
from jax.experimental import pallas as pl
from jax.experimental.pallas import tpu as pltpu


def _outconv_kernel(x_ref, w_ref, b_ref, o_ref):
    # x_ref: (Bn, Cin, T)   w_ref: (Cout, Cin)   b_ref: (Cout, 1)   o_ref: (Bn, Cout, T)
    # Cout/Cin are tiny; the kernel is HBM-bound, so the batched matmul form is fine.
    acc = jnp.einsum("oc,bct->bot", w_ref[...], x_ref[...],
                     preferred_element_type=jnp.float32)
    o_ref[...] = (acc + b_ref[...]).astype(o_ref.dtype)


def _vmem_capacity_bytes() -> int:
    try:
        return int(pltpu.get_tpu_info().vmem_capacity_bytes)
    except Exception:
        return 64 << 20  # conservative fallback: v7x physical VMEM per TensorCore


def _choose_tiling(N, Cin, Cout, HW, itemsize):
    """Pick (batch block, spatial tile, vmem limit) targeting ~4 MiB per grid step."""
    vmem = _vmem_capacity_bytes()
    # Explicit scoped-VMEM limit: safe on every generation (v5e default is only 16 MiB).
    vmem_limit = min(32 << 20, vmem // 2)
    # Bytes moved per grid step (input block + output block). Double-buffered by the
    # pipeline, so 2 * target stays well inside vmem_limit.
    target = min(4 << 20, vmem_limit // 8)

    per_lane = (Cin + Cout) * itemsize  # bytes per spatial position per batch element

    # 1) Spatial tile: full H*W (single contiguous Cin*HW DMA per batch element) if it
    #    fits the target, otherwise the largest multiple of 128 lanes under the target.
    lanes_target = max(128, target // per_lane)
    if HW <= lanes_target:
        t_hw = HW
    else:
        t_hw = min(HW, (lanes_target // 128) * 128)

    # 2) Fold batch elements into the block when the spatial tile already covers HW
    #    and a single-batch step would be far below the byte target.
    bn = 1
    if t_hw == HW and N > 1:
        step_bytes = per_lane * HW
        bn = int(max(1, min(N, target // max(step_bytes, 1))))

    # 3) Keep at least 2 parallel grid steps so v7x's two TensorCores are both busy.
    if pl.cdiv(N, bn) * pl.cdiv(HW, t_hw) < 2:
        if N >= 2:
            bn = pl.cdiv(N, 2)
        elif HW >= 256:
            t_hw = max(128, ((HW // 2 + 127) // 128) * 128)

    return bn, t_hw, vmem_limit


def out_conv(x_nchw, weight, bias):
    """1x1 conv. x_nchw: (N, Cin, H, W); weight: (Cout, Cin, 1, 1); bias: (Cout,)."""
    N, Cin, H, W = x_nchw.shape
    Cout = weight.shape[0]
    HW = H * W
    itemsize = jnp.dtype(x_nchw.dtype).itemsize

    # Free reshapes only — no transposes, no extra HBM traffic.
    x_flat = x_nchw.reshape(N, Cin, HW)   # (N, Cin, HW)
    w_mat = weight.reshape(Cout, Cin)     # (Cout, Cin)
    b_col = bias.reshape(Cout, 1)         # (Cout, 1) broadcasts along lanes

    bn, t_hw, vmem_limit = _choose_tiling(N, Cin, Cout, HW, itemsize)
    grid = (pl.cdiv(N, bn), pl.cdiv(HW, t_hw))

    cost = pl.CostEstimate(
        flops=2 * N * HW * Cin * Cout,
        transcendentals=0,
        bytes_accessed=itemsize * (N * HW * Cin + N * HW * Cout + Cin * Cout + Cout),
    )

    out_flat = pl.pallas_call(
        _outconv_kernel,
        out_shape=jax.ShapeDtypeStruct((N, Cout, HW), x_nchw.dtype),
        grid_spec=pltpu.PrefetchScalarGridSpec(
            num_scalar_prefetch=0,
            grid=grid,
            in_specs=[
                pl.BlockSpec((bn, Cin, t_hw), lambda n, t: (n, 0, t)),
                pl.BlockSpec((Cout, Cin), lambda n, t: (0, 0)),
                pl.BlockSpec((Cout, 1), lambda n, t: (0, 0)),
            ],
            out_specs=pl.BlockSpec((bn, Cout, t_hw), lambda n, t: (n, 0, t)),
        ),
        compiler_params=pltpu.CompilerParams(
            dimension_semantics=("parallel", "parallel"),
            vmem_limit_bytes=int(vmem_limit),
        ),
        cost_estimate=cost,
    )(x_flat, w_mat, b_col)

    # Free reshape back to NCHW.
    return out_flat.reshape(N, Cout, H, W)


if __name__ == "__main__":
    key = jax.random.PRNGKey(0)
    kx, kw, kb = jax.random.split(key, 3)

    # Small shapes consistent with OutConv(in_channels=4, out_channels=3)
    N, Cin, Cout, Hs, Ws = 2, 4, 3, 16, 16

    x = jax.random.normal(kx, (N, Cin, Hs, Ws), dtype=jnp.float32)
    # Deterministic parameter init (PyTorch-style uniform bound 1/sqrt(fan_in))
    bound = 1.0 / (Cin ** 0.5)
    weight = jax.random.uniform(kw, (Cout, Cin, 1, 1), jnp.float32, -bound, bound)
    bias = jax.random.uniform(kb, (Cout,), jnp.float32, -bound, bound)

    y = out_conv(x, weight, bias)
    jax.block_until_ready(y)

    # Reference check against plain-JAX 1x1 conv
    ref = jnp.einsum("nchw,oc->nohw", x, weight.reshape(Cout, Cin)) + bias[None, :, None, None]
    assert y.shape == (N, Cout, Hs, Ws)
    assert jnp.allclose(y, ref, atol=1e-5, rtol=1e-5)

    print("KERNEL_OK")
</pallas_src>

<mosaic_0001>
module attributes {stable_mosaic.version = 11 : i64} {
  func.func @_outconv_kernel(%arg0: i32, %arg1: i32, %arg2: memref<1x4x256xf32, #tpu.memory_space<vmem>>, %arg3: memref<3x4xf32, #tpu.memory_space<vmem>>, %arg4: memref<3x1xf32, #tpu.memory_space<vmem>>, %arg5: memref<1x3x256xf32, #tpu.memory_space<vmem>>) attributes {dimension_semantics = [#tpu.dimension_semantics<parallel>, #tpu.dimension_semantics<parallel>], iteration_bounds = array<i64: 2, 1>, scalar_prefetch = 0 : i64, scratch_operands = 0 : i64, tpu.core_type = #tpu.core_type<tc>, window_params = [{transform_indices = @transform_0, window_bounds = array<i64: 1, 4, 256>}, {pipeline_mode = #tpu.pipeline_mode<synchronous>, transform_indices = @transform_1, window_bounds = array<i64: 3, 4>}, {pipeline_mode = #tpu.pipeline_mode<synchronous>, transform_indices = @transform_2, window_bounds = array<i64: 3, 1>}, {transform_indices = @transform_3, window_bounds = array<i64: 1, 3, 256>}]} {
    %c0 = arith.constant 0 : index
    %c0_0 = arith.constant 0 : index
    %0 = vector.load %arg3[%c0, %c0_0] : memref<3x4xf32, #tpu.memory_space<vmem>>, vector<3x4xf32>
    %c0_1 = arith.constant 0 : index
    %c0_2 = arith.constant 0 : index
    %c0_3 = arith.constant 0 : index
    %1 = vector.load %arg2[%c0_1, %c0_2, %c0_3] : memref<1x4x256xf32, #tpu.memory_space<vmem>>, vector<1x4x256xf32>
    "tpu.trace_start"() <{level = 10 : i32, message = "oc,bct->bot"}> : () -> ()
    %cst = arith.constant dense<0.000000e+00> : vector<1x256x3xf32>
    %2 = tpu.matmul %1, %0, %cst {dimension_numbers = #tpu.dot_dimension_numbers<[1], [1], [0, 2], [0], [0, 0, 0, 2, 1, 0], [], []>} : vector<1x4x256xf32>, vector<3x4xf32>, vector<1x256x3xf32> -> vector<1x256x3xf32>
    %3 = tpu.transpose %2, [0, 2, 1] : vector<1x256x3xf32> -> vector<1x3x256xf32>
    "tpu.trace_stop"() : () -> ()
    %c0_4 = arith.constant 0 : index
    %c0_5 = arith.constant 0 : index
    %4 = vector.load %arg4[%c0_4, %c0_5] : memref<3x1xf32, #tpu.memory_space<vmem>>, vector<3x1xf32>
    %5 = vector.shape_cast %4 : vector<3x1xf32> to vector<1x3x1xf32>
    %6 = vector.broadcast %5 : vector<1x3x1xf32> to vector<1x3x256xf32>
    %7 = arith.addf %3, %6 : vector<1x3x256xf32>
    %c0_6 = arith.constant 0 : index
    %c0_7 = arith.constant 0 : index
    %c0_8 = arith.constant 0 : index
    %8 = vector.load %arg5[%c0_6, %c0_7, %c0_8] : memref<1x3x256xf32, #tpu.memory_space<vmem>>, vector<1x3x256xf32>
    tpu.vector_store %arg5[%c0_6, %c0_7, %c0_8], %7 {strides = array<i32>} : memref<1x3x256xf32, #tpu.memory_space<vmem>>, vector<1x3x256xf32>,
    return
  }
  func.func @transform_0(%arg0: i32, %arg1: i32) -> (i32, i32, i32) {
    %c0_i32 = arith.constant 0 : i32
    %c0_i32_0 = arith.constant 0 : i32
    return %arg0, %c0_i32, %arg1 : i32, i32, i32
  }
  func.func @transform_1(%arg0: i32, %arg1: i32) -> (i32, i32) {
    %c0_i32 = arith.constant 0 : i32
    %c0_i32_0 = arith.constant 0 : i32
    %c0_i32_1 = arith.constant 0 : i32
    return %c0_i32, %c0_i32_0 : i32, i32
  }
  func.func @transform_2(%arg0: i32, %arg1: i32) -> (i32, i32) {
    %c0_i32 = arith.constant 0 : i32
    %c0_i32_0 = arith.constant 0 : i32
    %c0_i32_1 = arith.constant 0 : i32
    return %c0_i32, %c0_i32_0 : i32, i32
  }
  func.func @transform_3(%arg0: i32, %arg1: i32) -> (i32, i32, i32) {
    %c0_i32 = arith.constant 0 : i32
    %c0_i32_0 = arith.constant 0 : i32
    return %arg0, %c0_i32, %arg1 : i32, i32, i32
  }
}

</mosaic_0001>

<llo_original>
// kernel: tpu_custom_call.1
$region0: #{tpu_custom_call.1}
  #allocation0 [shape = 'u32[]', space=smem, size = 0x4, offset = 0x4, fixed_abs, tag = 'smem constant byte address 0x4 - core index']
  #allocation1 [shape = 'u32[144,128]{1,0:T(1,128)}', space=vmem, size = 0x12000, scoped, tag = 'internal scratch']
  %s0 = inlined_call_operand.hbm [shape: f32[2,4,256], index: 0, kind: input, shape index: {}]
  %s1 = inlined_call_operand.vmem [shape: f32[3,4], index: 1, kind: input, shape index: {}]
  %s2 = inlined_call_operand.vmem [shape: f32[3,1], index: 2, kind: input, shape index: {}]
  %s3 = inlined_call_operand.vmem [shape: f32[2,3,256], index: 3, kind: output, shape index: {}]
  %s4 = sld [smem:[#allocation0]]
  $region49: #{tpu_custom_call.1} parent=0
    _
  %s6 = ssub.s32 1, %s4
  %s7 = scalar_select 0, %s6, %s4
  $region1: #{tpu_custom_call.1} parent=0
    #allocation2 [shape = 'u8[8192]{0}', space=vmem, size = 0x2000, scoped, tag = 'input window, operand 0']
    #allocation3 [shape = 's32[2]{0}', space=sflag, size = 0x8, scoped, tag = 'scoped memory for tpu_custom_call.1']
    %8 = vsyncpa [#allocation3], 0
    %s9 = scalar_lea.sflag [#allocation3], 1
    %10 = vsyncpa %s9, 0
    loop: start=0, step=1, limit=4
    $region2: #{tpu_custom_call.1} parent=1 // loop_pre_header
      _
    $region3: #{tpu_custom_call.1} parent=1 // loop_header
      %s12 = sphi 0, %s16
      %p13 = scmp.ge.s32.totalorder %s12, 4
      %s19 = sphi 0, %s31
      %s20 = sphi 0, %s27
      %s21 = sphi 0, %s19
      %s22 = sphi 0, %s20
      %s23 = sphi 0, %s21
      %s24 = sphi 0, %s22
      %s36 = sphi 0, %s38
      %s39 = sphi 0, %s36
      %s40 = sphi 0, %s39
      %s56 = sphi 0, %s40
      %s60 = sphi 0, %s60
      %s62 = sphi 0, %s60
      %s63 = sphi 0, %s62
      %s77 = sphi 0, %s63
      %s81 = sphi 0, %s81
      %s83 = sphi 0, %s81
      %s84 = sphi 0, %s83
      %s98 = sphi 0, %s84
      %s106 = sphi 0, %s108
      %s109 = sphi 0, %s106
      %s110 = sphi 0, %s109
      %s126 = sphi 0, %s110
    $region4: #{tpu_custom_call.1} parent=1 // loop_header_branch
      %15 = sbr.rel (%p13) target = $region8
    $region5: #{tpu_custom_call.1} parent=1 // loop_body
      %s17 = ssub.s32 %s12, 1
      %s18 = ssub.s32 %s12, 2
      %s25 = sadd.s32 1, %s20
      %p26 = scmp.ge.s32.totalorder %s25, 1
      %s27 = scalar_select %p26, 0, %s25
      %s28 = sadd.s32 1, %s19
      %s29 = scalar_select %p26, %s28, %s19
      %p30 = scmp.ge.s32.totalorder %s29, 2
      %s31 = scalar_select %p30, 0, %s29
      %s32 = ssub.s32 %s19, %s31
      %s33 = ssub.s32 %s20, %s27
      %s34 = sor.u32 %s32, %s33
      %p35 = scmp.eq.s32.totalorder %s34, 0
      %s37 = sadd.s32 %s36, 1
      %s38 = scalar_select %p35, %s36, %s37
      %p41 = pneg %p35
      %p42 = scmp.eq.s32.totalorder %s12, 1
      %p43 = por %p41, %p42
      %p44 = scmp.ne.s32.totalorder %s36, %s39
      %p45 = scmp.eq.s32.totalorder %s12, 0
      %p46 = por %p44, %p45
      %p47 = scmp.ne.s32.totalorder %s36, %s39
      %p48 = scmp.eq.s32.totalorder %s17, 1
      %p49 = por %p47, %p48
      %p50 = scmp.ne.s32.totalorder %s39, %s40
      %p51 = scmp.eq.s32.totalorder %s17, 0
      %p52 = por %p50, %p51
      %p53 = scmp.ne.s32.totalorder %s39, %s40
      %p54 = scmp.eq.s32.totalorder %s18, 1
      %p55 = por %p53, %p54
      %p57 = scmp.ne.s32.totalorder %s40, %s56
      %p58 = scmp.eq.s32.totalorder %s18, 0
      %p59 = por %p57, %p58
      %s61 = sadd.s32 %s60, 1
      %p64 = scmp.eq.s32.totalorder %s12, 1
      %p65 = scmp.ne.s32.totalorder %s60, %s62
      %p66 = scmp.eq.s32.totalorder %s12, 0
      %p67 = por %p65, %p66
      %p68 = scmp.ne.s32.totalorder %s60, %s62
      %p69 = scmp.eq.s32.totalorder %s17, 1
      %p70 = por %p68, %p69
      %p71 = scmp.ne.s32.totalorder %s62, %s63
      %p72 = scmp.eq.s32.totalorder %s17, 0
      %p73 = por %p71, %p72
      %p74 = scmp.ne.s32.totalorder %s62, %s63
      %p75 = scmp.eq.s32.totalorder %s18, 1
      %p76 = por %p74, %p75
      %p78 = scmp.ne.s32.totalorder %s63, %s77
      %p79 = scmp.eq.s32.totalorder %s18, 0
      %p80 = por %p78, %p79
      %s82 = sadd.s32 %s81, 1
      %p85 = scmp.eq.s32.totalorder %s12, 1
      %p86 = scmp.ne.s32.totalorder %s81, %s83
      %p87 = scmp.eq.s32.totalorder %s12, 0
      %p88 = por %p86, %p87
      %p89 = scmp.ne.s32.totalorder %s81, %s83
      %p90 = scmp.eq.s32.totalorder %s17, 1
      %p91 = por %p89, %p90
      %p92 = scmp.ne.s32.totalorder %s83, %s84
      %p93 = scmp.eq.s32.totalorder %s17, 0
      %p94 = por %p92, %p93
      %p95 = scmp.ne.s32.totalorder %s83, %s84
      %p96 = scmp.eq.s32.totalorder %s18, 1
      %p97 = por %p95, %p96
      %p99 = scmp.ne.s32.totalorder %s84, %s98
      %p100 = scmp.eq.s32.totalorder %s18, 0
      %p101 = por %p99, %p100
      %s102 = ssub.s32 %s19, %s31
      %s103 = ssub.s32 %s20, %s27
      %s104 = sor.u32 %s102, %s103
      %p105 = scmp.eq.s32.totalorder %s104, 0
      %s107 = sadd.s32 %s106, 1
      %s108 = scalar_select %p105, %s106, %s107
      %p111 = pneg %p105
      %p112 = scmp.eq.s32.totalorder %s12, 1
      %p113 = por %p111, %p112
      %p114 = scmp.ne.s32.totalorder %s106, %s109
      %p115 = scmp.eq.s32.totalorder %s12, 0
      %p116 = por %p114, %p115
      %p117 = scmp.ne.s32.totalorder %s106, %s109
      %p118 = scmp.eq.s32.totalorder %s17, 1
      %p119 = por %p117, %p118
      %p120 = scmp.ne.s32.totalorder %s109, %s110
      %p121 = scmp.eq.s32.totalorder %s17, 0
      %p122 = por %p120, %p121
      %p123 = scmp.ne.s32.totalorder %s109, %s110
      %p124 = scmp.eq.s32.totalorder %s18, 1
      %p125 = por %p123, %p124
      %p127 = scmp.ne.s32.totalorder %s110, %s126
      %p128 = scmp.eq.s32.totalorder %s18, 0
      %p129 = por %p127, %p128
      %p130 = scmp.le.s32.totalorder 1, %s12
      %p131 = scmp.lt.s32.totalorder %s12, 3
      %p132 = pnand %p130, %p131
      %p133 = pneg %p132
      // Predicated region
      $region9: #{tpu_custom_call.1} parent=5 // pred_check
        _
      $region10: #{tpu_custom_call.1} parent=5 // pred_check_branch
        %135 = sbr.rel (%p132) target = $region12
      $region11: #{tpu_custom_call.1} parent=5 // pred_region
        %s136 = ssub.s32 %s12, 1
        // Predicated region
        $region13: #{tpu_custom_call.1} parent=11 // pred_check
          %p137 = pneg %p73
        $region14: #{tpu_custom_call.1} parent=11 // pred_check_branch
          %139 = sbr.rel (%p137) target = $region16
        $region15: #{tpu_custom_call.1} parent=11 // pred_region
          _
        $region16: #{tpu_custom_call.1} parent=11 // pred_fallthru
          _
        // Predicated region
        $region17: #{tpu_custom_call.1} parent=11 // pred_check
          %p140 = pneg %p94
        $region18: #{tpu_custom_call.1} parent=11 // pred_check_branch
          %142 = sbr.rel (%p140) target = $region20
        $region19: #{tpu_custom_call.1} parent=11 // pred_region
          _
        $region20: #{tpu_custom_call.1} parent=11 // pred_fallthru
          _
      $region12: #{tpu_custom_call.1} parent=5 // pred_fallthru
        _
      %p143 = scmp.lt.s32.totalorder %s12, 2
      // Predicated region
      $region21: #{tpu_custom_call.1} parent=5 // pred_check
        %p144 = pneg %p143
      $region22: #{tpu_custom_call.1} parent=5 // pred_check_branch
        %146 = sbr.rel (%p144) target = $region24
      $region23: #{tpu_custom_call.1} parent=5 // pred_region
        // Predicated region
        $region25: #{tpu_custom_call.1} parent=23 // pred_check
          %p147 = pneg %p46
        $region26: #{tpu_custom_call.1} parent=23 // pred_check_branch
          %149 = sbr.rel (%p147) target = $region28
        $region27: #{tpu_custom_call.1} parent=23 // pred_region
          %s150 = sand.u32 %s36, 1
          %s151 = scalar_lea.sflag [#allocation3], %s150
          %s152 = sand.u32 %s36, 1
          %s153 = smul.addr %s152, 8
          %s154 = scalar_lea.vmem [#allocation2], %s153
          %s155 = smul.u32 2, %s20
          %s157 = ssub.s32 128, 128
          %158 = vsyncadd %s151, %s157
          %s159 = smul.addr %s19, 2
          %s160 = sadd.s32 %s155, %s159
          %s161 = smul.addr %s160, 64
          %s162 = scalar_lea.hbm %s0, %s161
          %s164 = sshll.u32 %s154, 4
          %s165 = int_to_ptr.vmem [resolvable:$true] %s164
          %167 = dma.hbm_to_vmem [thread:$0]  %s162, 128, %s165, %s151
        $region28: #{tpu_custom_call.1} parent=23 // pred_fallthru
          _
      $region24: #{tpu_custom_call.1} parent=5 // pred_fallthru
        _
      %p168 = scmp.le.s32.totalorder 1, %s12
      %p169 = scmp.lt.s32.totalorder %s12, 3
      %p170 = pnand %p168, %p169
      %p171 = pneg %p170
      // Predicated region
      $region29: #{tpu_custom_call.1} parent=5 // pred_check
        _
      $region30: #{tpu_custom_call.1} parent=5 // pred_check_branch
        %173 = sbr.rel (%p170) target = $region32
      $region31: #{tpu_custom_call.1} parent=5 // pred_region
        %s174 = ssub.s32 %s12, 1
        %s175 = sand.u32 %s39, 1
        %s176 = scalar_lea.sflag [#allocation3], %s175
        %s177 = sand.u32 %s39, 1
        %s178 = smul.addr %s177, 8
        %s179 = scalar_lea.vmem [#allocation2], %s178
        // Predicated region
        $region33: #{tpu_custom_call.1} parent=31 // pred_check
          %p180 = pneg %p52
        $region34: #{tpu_custom_call.1} parent=31 // pred_check_branch
          %182 = sbr.rel (%p180) target = $region36
        $region35: #{tpu_custom_call.1} parent=31 // pred_region
          %183 = dma.done %s176, 128
        $region36: #{tpu_custom_call.1} parent=31 // pred_fallthru
          _
        %s184 = sand.u32 %s39, 1
        %s185 = scalar_lea.sflag [#allocation3], %s184
        %s186 = sand.u32 %s39, 1
        %s187 = smul.addr %s186, 8
        %s188 = scalar_lea.vmem [#allocation2], %s187
        %p189 = pneg %p52
        %p190 = pneg %p49
        %p191 = pneg %p73
        %p192 = pneg %p70
        %p193 = pneg %p94
        %p194 = pneg %p91
        %p195 = pneg %p122
        %p196 = pneg %p119
        %s197 = smul.u32 2, %s22
        %p198 = scmp.lt.s32.totalorder %s21, 1
        %s199 = scalar_select %p198, %s21, 1
        %p200 = scmp.lt.s32.totalorder %s197, 1
        %s201 = scalar_select %p200, %s197, 1
        %s202 = smul.addr %s199, 2
        %s203 = sadd.s32 %s201, %s202
        %s204 = smul.addr %s203, 4
        %s205 = scalar_lea.vmem %s3, %s204
        %s206 = smul.u32 2, %s22
        %s207 = smul.u32 2, %s22
        %p208 = scmp.lt.s32.totalorder %s21, 1
        %s209 = scalar_select %p208, %s21, 1
        %p210 = scmp.lt.s32.totalorder %s207, 1
        %s211 = scalar_select %p210, %s207, 1
        %s212 = smul.addr %s209, 2
        %s213 = sadd.s32 %s211, %s212
        %s214 = smul.addr %s213, 4
        %s215 = scalar_lea.vmem %s3, %s214
        %s216 = smul.u32 2, %s22
        %v217 = vld [vmem:[%s1] sm:$0x7]
        %v218 = vld [vmem:[%s179] sm:$0xff]
        %v220 = vcombine.high %v218, %v218
        %222 = vxpose.xlu0.b32.start [1/16] %v218, 128
        %223 = vxpose.xlu0.b32.cont [2/16] 0.0, 128
        %224 = vxpose.xlu0.b32.cont [3/16] 0.0, 128
        %225 = vxpose.xlu0.b32.cont [4/16] 0.0, 128
        %226 = vxpose.xlu0.b32.cont [5/16] 0.0, 128
        %227 = vxpose.xlu0.b32.cont [6/16] 0.0, 128
        %228 = vxpose.xlu0.b32.cont [7/16] 0.0, 128
        %229 = vxpose.xlu0.b32.cont [8/16] 0.0, 128
        %230 = vxpose.xlu0.b32.cont [9/16] 0.0, 128
        %231 = vxpose.xlu0.b32.cont [10/16] 0.0, 128
        %232 = vxpose.xlu0.b32.cont [11/16] 0.0, 128
        %233 = vxpose.xlu0.b32.cont [12/16] 0.0, 128
        %234 = vxpose.xlu0.b32.cont [13/16] 0.0, 128
        %235 = vxpose.xlu0.b32.cont [14/16] 0.0, 128
        %236 = vxpose.xlu0.b32.cont [15/16] 0.0, 128
        %237 = vxpose.xlu0.b32.end [16/16] 0.0, 128
        %v238 = vpop.trf.xlu0
        %v239 = vpop.trf.xlu0
        %v240 = vpop.trf.xlu0
        %v241 = vpop.trf.xlu0
        %v242 = vpop.trf.xlu0
        %v243 = vpop.trf.xlu0
        %v244 = vpop.trf.xlu0
        %v245 = vpop.trf.xlu0
        %v246 = vpop.trf.xlu0
        %v247 = vpop.trf.xlu0
        %v248 = vpop.trf.xlu0
        %v249 = vpop.trf.xlu0
        %v250 = vpop.trf.xlu0
        %v251 = vpop.trf.xlu0
        %v252 = vpop.trf.xlu0
        %v253 = vpop.trf.xlu0
        %254 = vxpose.xlu0.b32.start [1/16] %v220, 128
        %255 = vxpose.xlu0.b32.cont [2/16] 0.0, 128
        %256 = vxpose.xlu0.b32.cont [3/16] 0.0, 128
        %257 = vxpose.xlu0.b32.cont [4/16] 0.0, 128
        %258 = vxpose.xlu0.b32.cont [5/16] 0.0, 128
        %259 = vxpose.xlu0.b32.cont [6/16] 0.0, 128
        %260 = vxpose.xlu0.b32.cont [7/16] 0.0, 128
        %261 = vxpose.xlu0.b32.cont [8/16] 0.0, 128
        %262 = vxpose.xlu0.b32.cont [9/16] 0.0, 128
        %263 = vxpose.xlu0.b32.cont [10/16] 0.0, 128
        %264 = vxpose.xlu0.b32.cont [11/16] 0.0, 128
        %265 = vxpose.xlu0.b32.cont [12/16] 0.0, 128
        %266 = vxpose.xlu0.b32.cont [13/16] 0.0, 128
        %267 = vxpose.xlu0.b32.cont [14/16] 0.0, 128
        %268 = vxpose.xlu0.b32.cont [15/16] 0.0, 128
        %269 = vxpose.xlu0.b32.end [16/16] 0.0, 128
        %v270 = vpop.trf.xlu0
        %v271 = vpop.trf.xlu0
        %v272 = vpop.trf.xlu0
        %v273 = vpop.trf.xlu0
        %v274 = vpop.trf.xlu0
        %v275 = vpop.trf.xlu0
        %v276 = vpop.trf.xlu0
        %v277 = vpop.trf.xlu0
        %v278 = vpop.trf.xlu0
        %v279 = vpop.trf.xlu0
        %v280 = vpop.trf.xlu0
        %v281 = vpop.trf.xlu0
        %v282 = vpop.trf.xlu0
        %v283 = vpop.trf.xlu0
        %v284 = vpop.trf.xlu0
        %v285 = vpop.trf.xlu0
        %vm286 = vcmask 31744
        %v288 = vsel %vm286, %v238, 0
        %v291 = vsel %vm286, %v239, 0
        %v294 = vsel %vm286, %v240, 0
        %v297 = vsel %vm286, %v241, 0
        %v300 = vsel %vm286, %v242, 0
        %v303 = vsel %vm286, %v243, 0
        %v306 = vsel %vm286, %v244, 0
        %v309 = vsel %vm286, %v245, 0
        %v312 = vsel %vm286, %v246, 0
        %v315 = vsel %vm286, %v247, 0
        %v318 = vsel %vm286, %v248, 0
        %v321 = vsel %vm286, %v249, 0
        %v324 = vsel %vm286, %v250, 0
        %v327 = vsel %vm286, %v251, 0
        %v330 = vsel %vm286, %v252, 0
        %v333 = vsel %vm286, %v253, 0
        %v336 = vsel %vm286, %v270, 0
        %v339 = vsel %vm286, %v271, 0
        %v342 = vsel %vm286, %v272, 0
        %v345 = vsel %vm286, %v273, 0
        %v348 = vsel %vm286, %v274, 0
        %v351 = vsel %vm286, %v275, 0
        %v354 = vsel %vm286, %v276, 0
        %v357 = vsel %vm286, %v277, 0
        %v360 = vsel %vm286, %v278, 0
        %v363 = vsel %vm286, %v279, 0
        %v366 = vsel %vm286, %v280, 0
        %v369 = vsel %vm286, %v281, 0
        %v372 = vsel %vm286, %v282, 0
        %v375 = vsel %vm286, %v283, 0
        %v378 = vsel %vm286, %v284, 0
        %v381 = vsel %vm286, %v285, 0
        %v384 = vsel %vm286, %v217, 0
        %386 = vmatprep.subr.mxu0 0.0
        %387 = vmatpush1.xpose.msra.mxu0 0.0
        %388 = vmatprep.subr.mxu0 0.0
        %389 = vmatpush1.xpose.msra.mxu0 0.0
        %390 = vmatprep.subr.mxu0 0.0
        %391 = vmatpush1.xpose.msra.mxu0 0.0
        %392 = vmatprep.subr.mxu0 0.0
        %393 = vmatpush1.xpose.msra.mxu0 0.0
        %394 = vmatprep.subr.mxu0 0.0
        %395 = vmatpush1.xpose.msra.mxu0 0.0
        %396 = vmatprep.subr.mxu0 0.0
        %397 = vmatpush1.xpose.msra.mxu0 0.0
        %398 = vmatprep.subr.mxu0 0.0
        %399 = vmatpush1.xpose.msra.mxu0 0.0
        %400 = vmatprep.subr.mxu0 0.0
        %401 = vmatpush1.xpose.msra.mxu0 0.0
        %402 = vmatprep.subr.mxu0 0.0
        %403 = vmatpush1.xpose.msra.mxu0 0.0
        %404 = vmatprep.subr.mxu0 0.0
        %405 = vmatpush1.xpose.msra.mxu0 0.0
        %406 = vmatprep.subr.mxu0 0.0
        %407 = vmatpush1.xpose.msra.mxu0 0.0
        %408 = vmatprep.subr.mxu0 0.0
        %409 = vmatpush1.xpose.msra.mxu0 0.0
        %410 = vmatprep.subr.mxu0 0.0
        %411 = vmatpush1.xpose.msra.mxu0 0.0
        %412 = vmatprep.subr.mxu0 0.0
        %413 = vmatpush1.xpose.msra.mxu0 0.0
        %414 = vmatprep.subr.mxu0 0.0
        %415 = vmatpush1.xpose.msra.mxu0 0.0
        %416 = vmatprep.subr.mxu0 0.0
        %417 = vmatpush1.xpose.msra.mxu0 %v384
        %418 = vmatprep.subr.mxu0 0.0
        %419 = vmatpush2.xpose.msra.mxu0 0.0
        %420 = vmatprep.subr.mxu0 0.0
        %421 = vmatpush2.xpose.msra.mxu0 0.0
        %422 = vmatprep.subr.mxu0 0.0
        %423 = vmatpush2.xpose.msra.mxu0 0.0
        %424 = vmatprep.subr.mxu0 0.0
        %425 = vmatpush2.xpose.msra.mxu0 0.0
        %426 = vmatprep.subr.mxu0 0.0
        %427 = vmatpush2.xpose.msra.mxu0 0.0
        %428 = vmatprep.subr.mxu0 0.0
        %429 = vmatpush2.xpose.msra.mxu0 0.0
        %430 = vmatprep.subr.mxu0 0.0
        %431 = vmatpush2.xpose.msra.mxu0 0.0
        %432 = vmatprep.subr.mxu0 0.0
        %433 = vmatpush2.xpose.msra.mxu0 0.0
        %434 = vmatprep.subr.mxu0 0.0
        %435 = vmatpush2.xpose.msra.mxu0 0.0
        %436 = vmatprep.subr.mxu0 0.0
        %437 = vmatpush2.xpose.msra.mxu0 0.0
        %438 = vmatprep.subr.mxu0 0.0
        %439 = vmatpush2.xpose.msra.mxu0 0.0
        %440 = vmatprep.subr.mxu0 0.0
        %441 = vmatpush2.xpose.msra.mxu0 0.0
        %442 = vmatprep.subr.mxu0 0.0
        %443 = vmatpush2.xpose.msra.mxu0 0.0
        %444 = vmatprep.subr.mxu0 0.0
        %445 = vmatpush2.xpose.msra.mxu0 0.0
        %446 = vmatprep.subr.mxu0 0.0
        %447 = vmatpush2.xpose.msra.mxu0 0.0
        %448 = vmatprep.subr.mxu0 0.0
        %449 = vmatpush2.xpose.msra.mxu0 0.0
        %450 = vmatprep.mubr.f32.mxu0 0.0
        %451 = vmatmul.mubr.f32.gmra.mxu0 %v288
        %v452 = vpop.f32.mrf.mxu0
        %v453 = vadd.f32 0.0, %v452
        %v454 = vpop.f32.mrf.mxu0
        %455 = vmatprep.mubr.f32.mxu0 0.0
        %456 = vmatmul.mubr.f32.gmra.mxu0 %v291
        %v457 = vpop.f32.mrf.mxu0
        %v458 = vadd.f32 0.0, %v457
        %v459 = vpop.f32.mrf.mxu0
        %460 = vmatprep.mubr.f32.mxu0 0.0
        %461 = vmatmul.mubr.f32.gmra.mxu0 %v294
        %v462 = vpop.f32.mrf.mxu0
        %v463 = vadd.f32 0.0, %v462
        %v464 = vpop.f32.mrf.mxu0
        %465 = vmatprep.mubr.f32.mxu0 0.0
        %466 = vmatmul.mubr.f32.gmra.mxu0 %v297
        %v467 = vpop.f32.mrf.mxu0
        %v468 = vadd.f32 0.0, %v467
        %v469 = vpop.f32.mrf.mxu0
        %470 = vmatprep.mubr.f32.mxu0 0.0
        %471 = vmatmul.mubr.f32.gmra.mxu0 %v300
        %v472 = vpop.f32.mrf.mxu0
        %v473 = vadd.f32 0.0, %v472
        %v474 = vpop.f32.mrf.mxu0
        %475 = vmatprep.mubr.f32.mxu0 0.0
        %476 = vmatmul.mubr.f32.gmra.mxu0 %v303
        %v477 = vpop.f32.mrf.mxu0
        %v478 = vadd.f32 0.0, %v477
        %v479 = vpop.f32.mrf.mxu0
        %480 = vmatprep.mubr.f32.mxu0 0.0
        %481 = vmatmul.mubr.f32.gmra.mxu0 %v306
        %v482 = vpop.f32.mrf.mxu0
        %v483 = vadd.f32 0.0, %v482
        %v484 = vpop.f32.mrf.mxu0
        %485 = vmatprep.mubr.f32.mxu0 0.0
        %486 = vmatmul.mubr.f32.gmra.mxu0 %v309
        %v487 = vpop.f32.mrf.mxu0
        %v488 = vadd.f32 0.0, %v487
        %v489 = vpop.f32.mrf.mxu0
        %490 = vmatprep.mubr.f32.mxu0 0.0
        %491 = vmatmul.mubr.f32.gmra.mxu0 %v312
        %v492 = vpop.f32.mrf.mxu0
        %v493 = vadd.f32 0.0, %v492
        %v494 = vpop.f32.mrf.mxu0
        %495 = vmatprep.mubr.f32.mxu0 0.0
        %496 = vmatmul.mubr.f32.gmra.mxu0 %v315
        %v497 = vpop.f32.mrf.mxu0
        %v498 = vadd.f32 0.0, %v497
        %v499 = vpop.f32.mrf.mxu0
        %500 = vmatprep.mubr.f32.mxu0 0.0
        %501 = vmatmul.mubr.f32.gmra.mxu0 %v318
        %v502 = vpop.f32.mrf.mxu0
        %v503 = vadd.f32 0.0, %v502
        %v504 = vpop.f32.mrf.mxu0
        %505 = vmatprep.mubr.f32.mxu0 0.0
        %506 = vmatmul.mubr.f32.gmra.mxu0 %v321
        %v507 = vpop.f32.mrf.mxu0
        %v508 = vadd.f32 0.0, %v507
        %v509 = vpop.f32.mrf.mxu0
        %510 = vmatprep.mubr.f32.mxu0 0.0
        %511 = vmatmul.mubr.f32.gmra.mxu0 %v324
        %v512 = vpop.f32.mrf.mxu0
        %v513 = vadd.f32 0.0, %v512
        %v514 = vpop.f32.mrf.mxu0
        %515 = vmatprep.mubr.f32.mxu0 0.0
        %516 = vmatmul.mubr.f32.gmra.mxu0 %v327
        %v517 = vpop.f32.mrf.mxu0
        %v518 = vadd.f32 0.0, %v517
        %v519 = vpop.f32.mrf.mxu0
        %520 = vmatprep.mubr.f32.mxu0 0.0
        %521 = vmatmul.mubr.f32.gmra.mxu0 %v330
        %v522 = vpop.f32.mrf.mxu0
        %v523 = vadd.f32 0.0, %v522
        %v524 = vpop.f32.mrf.mxu0
        %525 = vmatprep.mubr.f32.mxu0 0.0
        %526 = vmatmul.mubr.f32.gmra.mxu0 %v333
        %v527 = vpop.f32.mrf.mxu0
        %v528 = vadd.f32 0.0, %v527
        %v529 = vpop.f32.mrf.mxu0
        %530 = vmatprep.mubr.f32.mxu0 0.0
        %531 = vmatmul.mubr.f32.gmra.mxu0 %v336
        %v532 = vpop.f32.mrf.mxu0
        %v533 = vadd.f32 0.0, %v532
        %v534 = vpop.f32.mrf.mxu0
        %535 = vmatprep.mubr.f32.mxu0 0.0
        %536 = vmatmul.mubr.f32.gmra.mxu0 %v339
        %v537 = vpop.f32.mrf.mxu0
        %v538 = vadd.f32 0.0, %v537
        %v539 = vpop.f32.mrf.mxu0
        %540 = vmatprep.mubr.f32.mxu0 0.0
        %541 = vmatmul.mubr.f32.gmra.mxu0 %v342
        %v542 = vpop.f32.mrf.mxu0
        %v543 = vadd.f32 0.0, %v542
        %v544 = vpop.f32.mrf.mxu0
        %545 = vmatprep.mubr.f32.mxu0 0.0
        %546 = vmatmul.mubr.f32.gmra.mxu0 %v345
        %v547 = vpop.f32.mrf.mxu0
        %v548 = vadd.f32 0.0, %v547
        %v549 = vpop.f32.mrf.mxu0
        %550 = vmatprep.mubr.f32.mxu0 0.0
        %551 = vmatmul.mubr.f32.gmra.mxu0 %v348
        %v552 = vpop.f32.mrf.mxu0
        %v553 = vadd.f32 0.0, %v552
        %v554 = vpop.f32.mrf.mxu0
        %555 = vmatprep.mubr.f32.mxu0 0.0
        %556 = vmatmul.mubr.f32.gmra.mxu0 %v351
        %v557 = vpop.f32.mrf.mxu0
        %v558 = vadd.f32 0.0, %v557
        %v559 = vpop.f32.mrf.mxu0
        %560 = vmatprep.mubr.f32.mxu0 0.0
        %561 = vmatmul.mubr.f32.gmra.mxu0 %v354
        %v562 = vpop.f32.mrf.mxu0
        %v563 = vadd.f32 0.0, %v562
        %v564 = vpop.f32.mrf.mxu0
        %565 = vmatprep.mubr.f32.mxu0 0.0
        %566 = vmatmul.mubr.f32.gmra.mxu0 %v357
        %v567 = vpop.f32.mrf.mxu0
        %v568 = vadd.f32 0.0, %v567
        %v569 = vpop.f32.mrf.mxu0
        %570 = vmatprep.mubr.f32.mxu0 0.0
        %571 = vmatmul.mubr.f32.gmra.mxu0 %v360
        %v572 = vpop.f32.mrf.mxu0
        %v573 = vadd.f32 0.0, %v572
        %v574 = vpop.f32.mrf.mxu0
        %575 = vmatprep.mubr.f32.mxu0 0.0
        %576 = vmatmul.mubr.f32.gmra.mxu0 %v363
        %v577 = vpop.f32.mrf.mxu0
        %v578 = vadd.f32 0.0, %v577
        %v579 = vpop.f32.mrf.mxu0
        %580 = vmatprep.mubr.f32.mxu0 0.0
        %581 = vmatmul.mubr.f32.gmra.mxu0 %v366
        %v582 = vpop.f32.mrf.mxu0
        %v583 = vadd.f32 0.0, %v582
        %v584 = vpop.f32.mrf.mxu0
        %585 = vmatprep.mubr.f32.mxu0 0.0
        %586 = vmatmul.mubr.f32.gmra.mxu0 %v369
        %v587 = vpop.f32.mrf.mxu0
        %v588 = vadd.f32 0.0, %v587
        %v589 = vpop.f32.mrf.mxu0
        %590 = vmatprep.mubr.f32.mxu0 0.0
        %591 = vmatmul.mubr.f32.gmra.mxu0 %v372
        %v592 = vpop.f32.mrf.mxu0
        %v593 = vadd.f32 0.0, %v592
        %v594 = vpop.f32.mrf.mxu0
        %595 = vmatprep.mubr.f32.mxu0 0.0
        %596 = vmatmul.mubr.f32.gmra.mxu0 %v375
        %v597 = vpop.f32.mrf.mxu0
        %v598 = vadd.f32 0.0, %v597
        %v599 = vpop.f32.mrf.mxu0
        %600 = vmatprep.mubr.f32.mxu0 0.0
        %601 = vmatmul.mubr.f32.gmra.mxu0 %v378
        %v602 = vpop.f32.mrf.mxu0
        %v603 = vadd.f32 0.0, %v602
        %v604 = vpop.f32.mrf.mxu0
        %605 = vmatprep.mubr.f32.mxu0 0.0
        %606 = vmatmul.mubr.f32.gmra.mxu0 %v381
        %v607 = vpop.f32.mrf.mxu0
        %v608 = vadd.f32 0.0, %v607
        %v609 = vpop.f32.mrf.mxu0
        %610 = vdwg.mxu0
        %611 = vxpose.xlu0.b32.start [1/16] %v453, 128
        %612 = vxpose.xlu0.b32.cont [2/16] %v458, 128
        %613 = vxpose.xlu0.b32.cont [3/16] %v463, 128
        %614 = vxpose.xlu0.b32.cont [4/16] %v468, 128
        %615 = vxpose.xlu0.b32.cont [5/16] %v473, 128
        %616 = vxpose.xlu0.b32.cont [6/16] %v478, 128
        %617 = vxpose.xlu0.b32.cont [7/16] %v483, 128
        %618 = vxpose.xlu0.b32.cont [8/16] %v488, 128
        %619 = vxpose.xlu0.b32.cont [9/16] %v493, 128
        %620 = vxpose.xlu0.b32.cont [10/16] %v498, 128
        %621 = vxpose.xlu0.b32.cont [11/16] %v503, 128
        %622 = vxpose.xlu0.b32.cont [12/16] %v508, 128
        %623 = vxpose.xlu0.b32.cont [13/16] %v513, 128
        %624 = vxpose.xlu0.b32.cont [14/16] %v518, 128
        %625 = vxpose.xlu0.b32.cont [15/16] %v523, 128
        %626 = vxpose.xlu0.b32.end [16/16] %v528, 128
        %v627 = vpop.trf.xlu0
        %v628 = vpop.trf.xlu0
        %v629 = vpop.trf.xlu0
        %v630 = vpop.trf.xlu0
        %v631 = vpop.trf.xlu0
        %v632 = vpop.trf.xlu0
        %v633 = vpop.trf.xlu0
        %v634 = vpop.trf.xlu0
        %v635 = vpop.trf.xlu0
        %v636 = vpop.trf.xlu0
        %v637 = vpop.trf.xlu0
        %v638 = vpop.trf.xlu0
        %v639 = vpop.trf.xlu0
        %v640 = vpop.trf.xlu0
        %v641 = vpop.trf.xlu0
        %v642 = vpop.trf.xlu0
        %643 = vxpose.xlu0.b32.start [1/16] %v533, 128
        %644 = vxpose.xlu0.b32.cont [2/16] %v538, 128
        %645 = vxpose.xlu0.b32.cont [3/16] %v543, 128
        %646 = vxpose.xlu0.b32.cont [4/16] %v548, 128
        %647 = vxpose.xlu0.b32.cont [5/16] %v553, 128
        %648 = vxpose.xlu0.b32.cont [6/16] %v558, 128
        %649 = vxpose.xlu0.b32.cont [7/16] %v563, 128
        %650 = vxpose.xlu0.b32.cont [8/16] %v568, 128
        %651 = vxpose.xlu0.b32.cont [9/16] %v573, 128
        %652 = vxpose.xlu0.b32.cont [10/16] %v578, 128
        %653 = vxpose.xlu0.b32.cont [11/16] %v583, 128
        %654 = vxpose.xlu0.b32.cont [12/16] %v588, 128
        %655 = vxpose.xlu0.b32.cont [13/16] %v593, 128
        %656 = vxpose.xlu0.b32.cont [14/16] %v598, 128
        %657 = vxpose.xlu0.b32.cont [15/16] %v603, 128
        %658 = vxpose.xlu0.b32.end [16/16] %v608, 128
        %v659 = vpop.trf.xlu0
        %v660 = vpop.trf.xlu0
        %v661 = vpop.trf.xlu0
        %v662 = vpop.trf.xlu0
        %v663 = vpop.trf.xlu0
        %v664 = vpop.trf.xlu0
        %v665 = vpop.trf.xlu0
        %v666 = vpop.trf.xlu0
        %v667 = vpop.trf.xlu0
        %v668 = vpop.trf.xlu0
        %v669 = vpop.trf.xlu0
        %v670 = vpop.trf.xlu0
        %v671 = vpop.trf.xlu0
        %v672 = vpop.trf.xlu0
        %v673 = vpop.trf.xlu0
        %v674 = vpop.trf.xlu0
        %v675 = vld [vmem:[%s2] sm:$0x7]
        %677 = vset.pattern.permute.xlu0 0
        %678 = vperm.xlu0 %677, %v675
        %v679 = vpop.permute.xlu0 %678
        %v681 = vadd.f32 %v627, %v679
        %v682 = vadd.f32 %v659, %v679
        %v685 = vcombine.low %v681, %v682
        %687 = vst [vmem:[%s215] sm:$0x77] %v685
        %s688 = smul.u32 2, %s22
        %p689 = scmp.lt.s32.totalorder %s21, 1
        %s690 = scalar_select %p689, %s21, 1
        %p691 = scmp.lt.s32.totalorder %s688, 1
        %s692 = scalar_select %p691, %s688, 1
        %s693 = smul.addr %s690, 2
        %s694 = sadd.s32 %s692, %s693
        %s695 = smul.addr %s694, 4
        %s696 = scalar_lea.vmem %s3, %s695
        // Predicated region
        $region37: #{tpu_custom_call.1} parent=31 // pred_check
          %p697 = pneg %p119
        $region38: #{tpu_custom_call.1} parent=31 // pred_check_branch
          %699 = sbr.rel (%p697) target = $region40
        $region39: #{tpu_custom_call.1} parent=31 // pred_region
          %s700 = smul.u32 2, %s22
        $region40: #{tpu_custom_call.1} parent=31 // pred_fallthru
          _
      $region32: #{tpu_custom_call.1} parent=5 // pred_fallthru
        _
      %p701 = scmp.le.s32.totalorder 2, %s12
      // Predicated region
      $region41: #{tpu_custom_call.1} parent=5 // pred_check
        %p702 = pneg %p701
      $region42: #{tpu_custom_call.1} parent=5 // pred_check_branch
        %704 = sbr.rel (%p702) target = $region44
      $region43: #{tpu_custom_call.1} parent=5 // pred_region
        %s705 = ssub.s32 %s12, 2
        // Predicated region
        $region45: #{tpu_custom_call.1} parent=43 // pred_check
          %p706 = pneg %p125
        $region46: #{tpu_custom_call.1} parent=43 // pred_check_branch
          %708 = sbr.rel (%p706) target = $region48
        $region47: #{tpu_custom_call.1} parent=43 // pred_region
          %s709 = smul.u32 2, %s24
          %p710 = scmp.lt.s32.totalorder %s23, 1
          %s711 = scalar_select %p710, %s23, 1
          %p712 = scmp.lt.s32.totalorder %s709, 1
          %s713 = scalar_select %p712, %s709, 1
          %s714 = smul.addr %s711, 2
          %s715 = sadd.s32 %s713, %s714
          %s716 = smul.addr %s715, 4
          %s717 = scalar_lea.vmem %s3, %s716
        $region48: #{tpu_custom_call.1} parent=43 // pred_fallthru
          _
      $region44: #{tpu_custom_call.1} parent=5 // pred_fallthru
        _
    $region6: #{tpu_custom_call.1} parent=1 // loop_footer
      %s16 = sadd.s32 1, %s12
    $region7: #{tpu_custom_call.1} parent=1 // loop_footer_branch
      %11 = sbr.rel target = $region3
    $region8: #{tpu_custom_call.1} parent=1 // loop_exit
      _
    %718 = vsyncpa [#allocation3], 1
    %s719 = scalar_lea.sflag [#allocation3], 1
    %720 = vsyncpa %s719, 1

</llo_original>
